<compile_context>
chip_gen: v7x
topology: tpu7x:2x2x1
jax: 0.10.0
libtpu: 0.0.40
codegen_flags: <defaults>
</compile_context>

<pallas_src>
import functools

import jax
import jax.numpy as jnp
from jax import lax
from jax.experimental import pallas as pl
from jax.experimental.pallas import tpu as pltpu

_LANE = 128


def _round_up(x, m):
    return ((x + m - 1) // m) * m


# ----------------------------------------------------------------------------
# Detection kernel: spatial-sum reduction over hw tiles + box head epilogue.
# grid = (frame_chunks [parallel], hw_tiles [arbitrary, reduction])
# ----------------------------------------------------------------------------
def _detect_kernel(frames_ref, w_det_ref, b_det_ref, boxes_ref, acc_ref, *,
                   img_size, hw_total, num_channels):
    j = pl.program_id(1)

    @pl.when(j == 0)
    def _():
        acc_ref[...] = jnp.zeros_like(acc_ref)

    # Partial spatial sum of this hw tile (lane reduce on the XLU).
    acc_ref[...] += jnp.sum(frames_ref[...].astype(jnp.float32), axis=-1)  # [tf, C]

    @pl.when(j == pl.num_programs(1) - 1)
    def _():
        pooled = acc_ref[...] * jnp.float32(1.0 / hw_total)                # [tf, C]
        b = b_det_ref[...]                                                 # [1, N*4]
        if num_channels <= 8:
            # K = C is tiny: a handful of VPU FMAs beats an MXU push/pop.
            w = w_det_ref[...]                                             # [C, N*4]
            logits = jnp.broadcast_to(b, (pooled.shape[0], b.shape[1]))
            for c in range(num_channels):                                  # static unroll
                logits = logits + pooled[:, c:c + 1] * w[c:c + 1, :]
        else:
            logits = jnp.dot(pooled, w_det_ref[...],
                             preferred_element_type=jnp.float32) + b
        boxes = jax.nn.sigmoid(logits) * jnp.float32(img_size)             # [tf, N*4]
        # Output kept 3-D (size-1 middle dim) so partial frame-chunk blocks
        # stay legal; the boxes tensor is negligible next to the frame DMA.
        boxes_ref[...] = boxes[:, None, :].astype(boxes_ref.dtype)


def detect_boxes(frames_flat, w_det, b_det, *, num_boxes, img_size,
                 frames_per_block=2, hw_tile=None):
    """frames_flat: [T, C, H*W] -> boxes [T, 1, N*4]."""
    T, C, HW = frames_flat.shape
    nout = num_boxes * 4
    tf = min(frames_per_block, T)
    assert T % tf == 0, "frame count must be divisible by the frame chunk"

    if hw_tile is None or hw_tile >= HW or HW % 128 != 0:
        # Pick the largest 128-multiple divisor of HW whose double-buffered
        # frame block stays within ~8 MiB; fall back to the full extent.
        hw_tile = HW
        if HW % 128 == 0:
            budget = (8 * 2**20) // (2 * tf * C * frames_flat.dtype.itemsize)
            if HW > max(budget, 128):
                cand = max((budget // 128) * 128, 128)
                while cand > 128 and HW % cand != 0:
                    cand -= 128
                hw_tile = cand
    assert HW % hw_tile == 0 and (hw_tile == HW or hw_tile % 128 == 0)
    n_hw = HW // hw_tile

    block_bytes = tf * C * hw_tile * frames_flat.dtype.itemsize
    vmem_limit = int(min(64 * 2**20, max(32 * 2**20, 4 * block_bytes)))

    return pl.pallas_call(
        functools.partial(_detect_kernel, img_size=img_size, hw_total=HW,
                          num_channels=C),
        out_shape=jax.ShapeDtypeStruct((T, 1, nout), jnp.float32),
        grid_spec=pltpu.PrefetchScalarGridSpec(
            num_scalar_prefetch=0,
            grid=(T // tf, n_hw),                       # hw reduction axis last
            in_specs=[
                pl.BlockSpec((tf, C, hw_tile), lambda i, j: (i, 0, j)),
                pl.BlockSpec((C, nout), lambda i, j: (0, 0)),
                pl.BlockSpec((1, nout), lambda i, j: (0, 0)),
            ],
            out_specs=pl.BlockSpec((tf, 1, nout), lambda i, j: (i, 0, 0)),
            scratch_shapes=[pltpu.VMEM((tf, C), jnp.float32)],  # partial sums
        ),
        compiler_params=pltpu.CompilerParams(
            dimension_semantics=("parallel", "arbitrary"),  # frames split across TCs
            vmem_limit_bytes=vmem_limit),
    )(frames_flat, w_det, b_det)


# ----------------------------------------------------------------------------
# Fused GRU tracker kernel: one grid step handles one chunk of boxes for the
# whole sequence.  Input-gate matmul + output projection are hoisted/batched;
# only ONE fused h @ W_hh_cat matmul + VPU/EUP gate math stay per timestep.
# ----------------------------------------------------------------------------
def _gru_fused_kernel(x_ref,                              # [1, T*Nb, D_in]
                      w_ih_ref,                           # [D_in, 3*Hp]
                      w_hh_ref,                           # [Hp, 3*Hp]
                      b_i_ref,                            # [1, 3*Hp]  (b_hr/b_hz folded)
                      b_hn_ref,                           # [1, Hp]
                      w_fc_ref, b_fc_ref,                 # [Hp, D_out], [1, D_out]
                      out_ref,                            # [1, T*Nb, D_out]
                      gi_s, h_all_s,                      # VMEM [T*Nb, 3*Hp], [T*Nb, Hp]
                      *, seq_len, boxes_per_chunk, hidden_pad):
    nb = boxes_per_chunk
    hp = hidden_pad
    x = x_ref[0]                                          # [T*Nb, D_in]

    # Hoisted, fused input-gate matmul: one MXU pass over all timesteps.
    gi_s[...] = jnp.dot(x, w_ih_ref[...],
                        preferred_element_type=jnp.float32) + b_i_ref[...]

    # Loop-invariant operands, loaded / broadcast exactly once.
    w_hh = w_hh_ref[...]                                  # [Hp, 3*Hp]
    b_hn = jnp.broadcast_to(b_hn_ref[...], (nb, hp))      # [Nb, Hp]

    def step(t, h):
        off = pl.multiple_of(t * nb, nb)
        gi = gi_s[pl.ds(off, nb), :]                      # [Nb, 3*Hp]
        # ONE fused recurrent matmul; gate slots are 128-lane aligned so the
        # r/z/n slices below are free vreg selections (no relayout).
        gh = jnp.dot(h, w_hh, preferred_element_type=jnp.float32)
        r = jax.nn.sigmoid(gi[:, 0 * hp:1 * hp] + gh[:, 0 * hp:1 * hp])
        z = jax.nn.sigmoid(gi[:, 1 * hp:2 * hp] + gh[:, 1 * hp:2 * hp])
        # PyTorch GRU: r gates the full (W_hn h + b_hn) term.
        n = jnp.tanh(gi[:, 2 * hp:3 * hp] + r * (gh[:, 2 * hp:3 * hp] + b_hn))
        h_new = (1.0 - z) * n + z * h
        h_all_s[pl.ds(off, nb), :] = h_new
        return h_new

    h0 = jnp.zeros((nb, hp), jnp.float32)
    # Bounded unroll keeps LLO MXU/EUP overlap without blowing vreg live ranges.
    lax.fori_loop(0, seq_len, step, h0, unroll=min(int(seq_len), 8))

    # Hoisted, batched output projection -> single write of the output slab.
    # TODO(synk): pad D_out to 128 lanes (and slice in the wrapper) if T*N grows large.
    out = jnp.dot(h_all_s[...], w_fc_ref[...],
                  preferred_element_type=jnp.float32) + b_fc_ref[...]
    out_ref[0] = out.astype(out_ref.dtype)


def rnn_tracker(box_chunks, packed, *, seq_len, boxes_per_chunk, hidden_pad):
    """box_chunks: [n_chunks, T*Nb, 4] (chunk-major, time-major inside a chunk)."""
    w_ih, w_hh, b_i, b_hn, w_fc, b_fc = packed
    n_chunks, tn, d_in = box_chunks.shape
    d_out = w_fc.shape[1]
    assert tn == seq_len * boxes_per_chunk
    assert boxes_per_chunk % 8 == 0, "boxes per chunk must be sublane-aligned (pad N)"

    def full_spec(a):
        return pl.BlockSpec(a.shape, lambda i, _nd=a.ndim: (0,) * _nd)

    scratch_bytes = tn * (3 * hidden_pad + hidden_pad) * 4
    vmem_limit = int(min(64 * 2**20, max(32 * 2**20, 4 * scratch_bytes)))

    return pl.pallas_call(
        functools.partial(_gru_fused_kernel, seq_len=seq_len,
                          boxes_per_chunk=boxes_per_chunk,
                          hidden_pad=hidden_pad),
        out_shape=jax.ShapeDtypeStruct((n_chunks, tn, d_out), jnp.float32),
        grid_spec=pltpu.PrefetchScalarGridSpec(
            num_scalar_prefetch=0,
            grid=(n_chunks,),                      # independent box chunks
            in_specs=[pl.BlockSpec((1, tn, d_in), lambda i: (i, 0, 0)),
                      full_spec(w_ih), full_spec(w_hh), full_spec(b_i),
                      full_spec(b_hn), full_spec(w_fc), full_spec(b_fc)],
            out_specs=pl.BlockSpec((1, tn, d_out), lambda i: (i, 0, 0)),
            scratch_shapes=[
                pltpu.VMEM((tn, 3 * hidden_pad), jnp.float32),  # fused gi slab
                pltpu.VMEM((tn, hidden_pad), jnp.float32),      # h_all for batched fc
            ],
        ),
        compiler_params=pltpu.CompilerParams(
            dimension_semantics=("parallel",),     # chunks split across v7x TCs
            vmem_limit_bytes=vmem_limit),
    )(box_chunks, w_ih, w_hh, b_i, b_hn, w_fc, b_fc)


# ----------------------------------------------------------------------------
# Parameter construction (deterministic, matches module __init__ shapes) and
# packing into fused, 128-lane-aligned kernel operands.
# ----------------------------------------------------------------------------
def init_params(key, *, channels, num_boxes, hidden_dim, input_dim=4, output_dim=4):
    ks = jax.random.split(key, 16)
    s_det = 1.0 / jnp.sqrt(jnp.float32(channels))
    s_rnn = 1.0 / jnp.sqrt(jnp.float32(hidden_dim))
    u = lambda k, shape, s: jax.random.uniform(k, shape, jnp.float32, -s, s)

    w_det = u(ks[0], (channels, num_boxes * 4), s_det)
    b_det = u(ks[1], (1, num_boxes * 4), s_det)

    wih_r = u(ks[2], (input_dim, hidden_dim), s_rnn)
    wih_z = u(ks[3], (input_dim, hidden_dim), s_rnn)
    wih_n = u(ks[4], (input_dim, hidden_dim), s_rnn)
    whh_r = u(ks[5], (hidden_dim, hidden_dim), s_rnn)
    whh_z = u(ks[6], (hidden_dim, hidden_dim), s_rnn)
    whh_n = u(ks[7], (hidden_dim, hidden_dim), s_rnn)
    bih_r = u(ks[8], (1, hidden_dim), s_rnn)
    bih_z = u(ks[9], (1, hidden_dim), s_rnn)
    bih_n = u(ks[10], (1, hidden_dim), s_rnn)
    bhh_r = u(ks[11], (1, hidden_dim), s_rnn)
    bhh_z = u(ks[12], (1, hidden_dim), s_rnn)
    bhh_n = u(ks[13], (1, hidden_dim), s_rnn)
    w_fc = u(ks[14], (hidden_dim, output_dim), s_rnn)
    b_fc = u(ks[15], (1, output_dim), s_rnn)

    det_params = (w_det, b_det)
    rnn_params = (wih_r, wih_z, wih_n, whh_r, whh_z, whh_n,
                  bih_r, bih_z, bih_n, bhh_r, bhh_z, bhh_n, w_fc, b_fc)
    return det_params, rnn_params


def pack_gru_params(rnn_params, hidden_dim):
    """Per-gate PyTorch-style weights -> fused 128-lane-aligned operands.

    Gate slots occupy [0:Hp], [Hp:2Hp], [2Hp:3Hp] with Hp = ceil(H/128)*128.
    Zero padding is inert: gi padding lanes are 0, gh padding lanes are 0, so
    h's padding lanes stay exactly 0 for all timesteps (h0 = 0)."""
    (wih_r, wih_z, wih_n, whh_r, whh_z, whh_n,
     bih_r, bih_z, bih_n, bhh_r, bhh_z, bhh_n, w_fc, b_fc) = rnn_params
    hp = _round_up(hidden_dim, _LANE)
    pad_c = lambda a: jnp.pad(a, ((0, 0), (0, hp - hidden_dim)))
    pad_r = lambda a: jnp.pad(a, ((0, hp - hidden_dim), (0, 0)))
    pad_rc = lambda a: jnp.pad(a, ((0, hp - hidden_dim), (0, hp - hidden_dim)))

    w_ih = jnp.concatenate([pad_c(wih_r), pad_c(wih_z), pad_c(wih_n)], axis=1)
    w_hh = jnp.concatenate([pad_rc(whh_r), pad_rc(whh_z), pad_rc(whh_n)], axis=1)
    # b_hr / b_hz are purely additive inside the sigmoid -> fold into gi bias.
    b_i = jnp.concatenate([pad_c(bih_r + bhh_r), pad_c(bih_z + bhh_z),
                           pad_c(bih_n)], axis=1)
    b_hn = pad_c(bhh_n)
    return (w_ih, w_hh, b_i, b_hn, pad_r(w_fc), b_fc), hp


# ----------------------------------------------------------------------------
# Full Tracker.forward
# ----------------------------------------------------------------------------
def tracker_forward(frames_nchw, det_params, rnn_packed, *, num_boxes, hidden_pad,
                    box_chunks=1, frames_per_block=2, hw_tile=None):
    """frames [T, C, H, W] -> predicted box sequence [N, T, 4]."""
    T, C, H, W = frames_nchw.shape
    assert num_boxes % box_chunks == 0
    nb = num_boxes // box_chunks
    w_det, b_det = det_params

    # Free reshape (no HBM transpose): channels on sublanes, spatial on lanes.
    frames_flat = frames_nchw.reshape(T, C, H * W)
    # TODO(synk): boxes scaled by W only; non-square frames may want per-axis scale.
    boxes = detect_boxes(frames_flat, w_det, b_det, num_boxes=num_boxes,
                         img_size=W, frames_per_block=frames_per_block,
                         hw_tile=hw_tile)                              # [T, 1, N*4]

    # Tiny layout shuffle (plain XLA on the small boxes tensor): group boxes
    # into independent chunks so both v7x TensorCores run the recurrence.
    box_cm = (boxes.reshape(T, box_chunks, nb, 4)
              .transpose(1, 0, 2, 3)
              .reshape(box_chunks, T * nb, 4))                         # chunk-major

    pred = rnn_tracker(box_cm, rnn_packed, seq_len=T, boxes_per_chunk=nb,
                       hidden_pad=hidden_pad)                          # [chunks, T*nb, 4]

    # PyTorch stacks per-frame boxes along dim=1 -> [N, T, 4]; match that.
    return (pred.reshape(box_chunks, T, nb, 4)
            .transpose(0, 2, 1, 3)
            .reshape(num_boxes, T, 4))


if __name__ == "__main__":
    T, C, H, W = 8, 4, 16, 16     # 8 frames of 4x16x16
    N_BOXES = 16                  # 2 chunks x 8 boxes: sublane-aligned chunks
    HIDDEN = 32                   # RNNTracker hidden_dim (small for the example)
    BOX_CHUNKS = 2                # gives v7x's second TensorCore work

    key = jax.random.PRNGKey(0)
    k_frames, k_params = jax.random.split(key)
    frames = jax.random.uniform(k_frames, (T, C, H, W), jnp.float32)

    det_params, rnn_params = init_params(
        k_params, channels=C, num_boxes=N_BOXES, hidden_dim=HIDDEN)
    rnn_packed, hidden_pad = pack_gru_params(rnn_params, HIDDEN)

    out = tracker_forward(frames, det_params, rnn_packed,
                          num_boxes=N_BOXES, hidden_pad=hidden_pad,
                          box_chunks=BOX_CHUNKS, frames_per_block=2,
                          hw_tile=128)   # exercise the hw-reduction grid axis
    out = jax.block_until_ready(out)
    assert out.shape == (N_BOXES, T, 4), out.shape
    print("KERNEL_OK")
</pallas_src>

<mosaic_0001>
module attributes {stable_mosaic.version = 11 : i64} {
  func.func @_detect_kernel(%arg0: i32, %arg1: i32, %arg2: memref<2x4x128xf32, #tpu.memory_space<vmem>>, %arg3: memref<4x64xf32, #tpu.memory_space<vmem>>, %arg4: memref<1x64xf32, #tpu.memory_space<vmem>>, %arg5: memref<2x1x64xf32, #tpu.memory_space<vmem>>, %arg6: memref<2x4xf32, #tpu.memory_space<vmem>>) attributes {dimension_semantics = [#tpu.dimension_semantics<parallel>, #tpu.dimension_semantics<arbitrary>], iteration_bounds = array<i64: 4, 2>, scalar_prefetch = 0 : i64, scratch_operands = 1 : i64, tpu.core_type = #tpu.core_type<tc>, window_params = [{transform_indices = @transform_0, window_bounds = array<i64: 2, 4, 128>}, {pipeline_mode = #tpu.pipeline_mode<synchronous>, transform_indices = @transform_1, window_bounds = array<i64: 4, 64>}, {pipeline_mode = #tpu.pipeline_mode<synchronous>, transform_indices = @transform_2, window_bounds = array<i64: 1, 64>}, {transform_indices = @transform_3, window_bounds = array<i64: 2, 1, 64>}]} {
    %c0_i32 = arith.constant 0 : i32
    %0 = arith.cmpi eq, %arg1, %c0_i32 : i32
    %1 = arith.extui %0 : i1 to i32
    %c0_i32_0 = arith.constant 0 : i32
    %2 = arith.cmpi ne, %1, %c0_i32_0 : i32
    scf.if %2 {
      %cst_8 = arith.constant 0.000000e+00 : f32
      %11 = vector.broadcast %cst_8 : f32 to vector<2x4xf32>
      %c0_9 = arith.constant 0 : index
      %c0_10 = arith.constant 0 : index
      %12 = vector.load %arg6[%c0_9, %c0_10] : memref<2x4xf32, #tpu.memory_space<vmem>>, vector<2x4xf32>
      tpu.vector_store %arg6[%c0_9, %c0_10], %11 {strides = array<i32>} : memref<2x4xf32, #tpu.memory_space<vmem>>, vector<2x4xf32>,
    } else {
    }
    %c0 = arith.constant 0 : index
    %c0_1 = arith.constant 0 : index
    %3 = vector.load %arg6[%c0, %c0_1] : memref<2x4xf32, #tpu.memory_space<vmem>>, vector<2x4xf32>
    %c0_2 = arith.constant 0 : index
    %c0_3 = arith.constant 0 : index
    %c0_4 = arith.constant 0 : index
    %4 = vector.load %arg2[%c0_2, %c0_3, %c0_4] : memref<2x4x128xf32, #tpu.memory_space<vmem>>, vector<2x4x128xf32>
    %cst = arith.constant dense<0.000000e+00> : vector<2x4xf32>
    %5 = vector.multi_reduction <add>, %4, %cst [2] : vector<2x4x128xf32> to vector<2x4xf32>
    %6 = arith.addf %3, %5 : vector<2x4xf32>
    %c0_5 = arith.constant 0 : index
    %c0_6 = arith.constant 0 : index
    %7 = vector.load %arg6[%c0_5, %c0_6] : memref<2x4xf32, #tpu.memory_space<vmem>>, vector<2x4xf32>
    tpu.vector_store %arg6[%c0_5, %c0_6], %6 {strides = array<i32>} : memref<2x4xf32, #tpu.memory_space<vmem>>, vector<2x4xf32>,
    %c1_i32 = arith.constant 1 : i32
    %8 = arith.cmpi eq, %arg1, %c1_i32 : i32
    %9 = arith.extui %8 : i1 to i32
    %c0_i32_7 = arith.constant 0 : i32
    %10 = arith.cmpi ne, %9, %c0_i32_7 : i32
    scf.if %10 {
      %c0_8 = arith.constant 0 : index
      %c0_9 = arith.constant 0 : index
      %11 = vector.load %arg6[%c0_8, %c0_9] : memref<2x4xf32, #tpu.memory_space<vmem>>, vector<2x4xf32>
      %cst_10 = arith.constant 3.906250e-03 : f32
      %12 = vector.broadcast %cst_10 : f32 to vector<2x4xf32>
      %13 = arith.mulf %11, %12 : vector<2x4xf32>
      %c0_11 = arith.constant 0 : index
      %c0_12 = arith.constant 0 : index
      %14 = vector.load %arg4[%c0_11, %c0_12] : memref<1x64xf32, #tpu.memory_space<vmem>>, vector<1x64xf32>
      %c0_13 = arith.constant 0 : index
      %c0_14 = arith.constant 0 : index
      %15 = vector.load %arg3[%c0_13, %c0_14] : memref<4x64xf32, #tpu.memory_space<vmem>>, vector<4x64xf32>
      %16 = vector.shape_cast %14 : vector<1x64xf32> to vector<1x64xf32>
      %17 = vector.broadcast %16 : vector<1x64xf32> to vector<2x64xf32>
      %18 = vector.extract_strided_slice %13 {offsets = [0, 0], sizes = [2, 1], strides = [1, 1]} : vector<2x4xf32> to vector<2x1xf32>
      %19 = vector.extract_strided_slice %15 {offsets = [0, 0], sizes = [1, 64], strides = [1, 1]} : vector<4x64xf32> to vector<1x64xf32>
      %20 = vector.broadcast %18 : vector<2x1xf32> to vector<2x64xf32>
      %21 = vector.broadcast %19 : vector<1x64xf32> to vector<2x64xf32>
      %22 = arith.mulf %20, %21 : vector<2x64xf32>
      %23 = arith.addf %17, %22 : vector<2x64xf32>
      %24 = vector.extract_strided_slice %13 {offsets = [0, 1], sizes = [2, 1], strides = [1, 1]} : vector<2x4xf32> to vector<2x1xf32>
      %25 = vector.extract_strided_slice %15 {offsets = [1, 0], sizes = [1, 64], strides = [1, 1]} : vector<4x64xf32> to vector<1x64xf32>
      %26 = vector.broadcast %24 : vector<2x1xf32> to vector<2x64xf32>
      %27 = vector.broadcast %25 : vector<1x64xf32> to vector<2x64xf32>
      %28 = arith.mulf %26, %27 : vector<2x64xf32>
      %29 = arith.addf %23, %28 : vector<2x64xf32>
      %30 = vector.extract_strided_slice %13 {offsets = [0, 2], sizes = [2, 1], strides = [1, 1]} : vector<2x4xf32> to vector<2x1xf32>
      %31 = vector.extract_strided_slice %15 {offsets = [2, 0], sizes = [1, 64], strides = [1, 1]} : vector<4x64xf32> to vector<1x64xf32>
      %32 = vector.broadcast %30 : vector<2x1xf32> to vector<2x64xf32>
      %33 = vector.broadcast %31 : vector<1x64xf32> to vector<2x64xf32>
      %34 = arith.mulf %32, %33 : vector<2x64xf32>
      %35 = arith.addf %29, %34 : vector<2x64xf32>
      %36 = vector.extract_strided_slice %13 {offsets = [0, 3], sizes = [2, 1], strides = [1, 1]} : vector<2x4xf32> to vector<2x1xf32>
      %37 = vector.extract_strided_slice %15 {offsets = [3, 0], sizes = [1, 64], strides = [1, 1]} : vector<4x64xf32> to vector<1x64xf32>
      %38 = vector.broadcast %36 : vector<2x1xf32> to vector<2x64xf32>
      %39 = vector.broadcast %37 : vector<1x64xf32> to vector<2x64xf32>
      %40 = arith.mulf %38, %39 : vector<2x64xf32>
      %41 = arith.addf %35, %40 : vector<2x64xf32>
      %42 = arith.negf %41 : vector<2x64xf32>
      %43 = math.exp %42 : vector<2x64xf32>
      %cst_15 = arith.constant 1.000000e+00 : f32
      %44 = vector.broadcast %cst_15 : f32 to vector<2x64xf32>
      %45 = arith.addf %44, %43 : vector<2x64xf32>
      %46 = arith.divf %44, %45 : vector<2x64xf32>
      %cst_16 = arith.constant 1.600000e+01 : f32
      %47 = vector.broadcast %cst_16 : f32 to vector<2x64xf32>
      %48 = arith.mulf %46, %47 : vector<2x64xf32>
      %49 = vector.shape_cast %48 : vector<2x64xf32> to vector<2x1x64xf32>
      %c0_17 = arith.constant 0 : index
      %c0_18 = arith.constant 0 : index
      %c0_19 = arith.constant 0 : index
      %50 = vector.load %arg5[%c0_17, %c0_18, %c0_19] : memref<2x1x64xf32, #tpu.memory_space<vmem>>, vector<2x1x64xf32>
      tpu.vector_store %arg5[%c0_17, %c0_18, %c0_19], %49 {strides = array<i32>} : memref<2x1x64xf32, #tpu.memory_space<vmem>>, vector<2x1x64xf32>,
    } else {
    }
    return
  }
  func.func @transform_0(%arg0: i32, %arg1: i32) -> (i32, i32, i32) {
    %c0_i32 = arith.constant 0 : i32
    %c0_i32_0 = arith.constant 0 : i32
    return %arg0, %c0_i32, %arg1 : i32, i32, i32
  }
  func.func @transform_1(%arg0: i32, %arg1: i32) -> (i32, i32) {
    %c0_i32 = arith.constant 0 : i32
    %c0_i32_0 = arith.constant 0 : i32
    %c0_i32_1 = arith.constant 0 : i32
    return %c0_i32, %c0_i32_0 : i32, i32
  }
  func.func @transform_2(%arg0: i32, %arg1: i32) -> (i32, i32) {
    %c0_i32 = arith.constant 0 : i32
    %c0_i32_0 = arith.constant 0 : i32
    %c0_i32_1 = arith.constant 0 : i32
    return %c0_i32, %c0_i32_0 : i32, i32
  }
  func.func @transform_3(%arg0: i32, %arg1: i32) -> (i32, i32, i32) {
    %c0_i32 = arith.constant 0 : i32
    %c0_i32_0 = arith.constant 0 : i32
    %c0_i32_1 = arith.constant 0 : i32
    return %arg0, %c0_i32, %c0_i32_0 : i32, i32, i32
  }
}

</mosaic_0001>

<llo_original>
// kernel: tpu_custom_call.1
$region0: #{tpu_custom_call.1}
  #allocation0 [shape = 'u32[]', space=smem, size = 0x4, offset = 0x4, fixed_abs, tag = 'smem constant byte address 0x4 - core index']
  #allocation1 [shape = 'u32[144,128]{1,0:T(1,128)}', space=vmem, size = 0x12000, scoped, tag = 'internal scratch']
  #allocation2 [shape = 'f32[2,4]{1,0:T(2,128)}', space=vmem, size = 0x400, scoped, tag = 'scratch operand']
  %s0 = inlined_call_operand.hbm [shape: f32[8,4,256], index: 0, kind: input, shape index: {}]
  %s1 = inlined_call_operand.hbm [shape: f32[4,64], index: 1, kind: input, shape index: {}]
  %s2 = inlined_call_operand.vmem [shape: f32[1,64], index: 2, kind: input, shape index: {}]
  %s3 = inlined_call_operand.hbm [shape: f32[8,1,64], index: 3, kind: output, shape index: {}]
  %s4 = sld [smem:[#allocation0]]
  $region61: #{tpu_custom_call.1} parent=0
    _
  %s6 = ssub.s32 1, %s4
  %s7 = scalar_select 0, %s6, %s4
  $region1: #{tpu_custom_call.1} parent=0
    #allocation3 [shape = 'u8[8192]{0}', space=vmem, size = 0x2000, scoped, tag = 'input window, operand 0']
    #allocation4 [shape = 's32[2]{0}', space=sflag, size = 0x8, scoped, tag = 'scoped memory for tpu_custom_call.1']
    #allocation5 [shape = 's32[2]{0}', space=sflag, size = 0x8, scoped, tag = 'scoped memory for tpu_custom_call.1']
    #allocation6 [shape = 'u8[2048]{0}', space=vmem, size = 0x800, scoped, tag = 'input window, operand 1, single buffered']
    #allocation7 [shape = 's32[1]{0}', space=sflag, size = 0x4, scoped, tag = 'scoped memory for tpu_custom_call.1']
    #allocation8 [shape = 'u8[2048]{0}', space=vmem, size = 0x800, scoped, tag = 'output window, operand 0']
    %8 = vsyncpa [#allocation4], 0
    %s9 = scalar_lea.sflag [#allocation4], 1
    %10 = vsyncpa %s9, 0
    %11 = vsyncpa [#allocation7], 0
    %12 = vsyncpa [#allocation5], 0
    %s13 = scalar_lea.sflag [#allocation5], 1
    %14 = vsyncpa %s13, 0
    loop: start=0, step=1, limit=10
    $region2: #{tpu_custom_call.1} parent=1 // loop_pre_header
      _
    $region3: #{tpu_custom_call.1} parent=1 // loop_header
      %s16 = sphi 0, %s20
      %p17 = scmp.ge.s32.totalorder %s16, 10
      %s23 = sphi 0, %s35
      %s24 = sphi 0, %s31
      %s25 = sphi 0, %s23
      %s26 = sphi 0, %s24
      %s27 = sphi 0, %s25
      %s28 = sphi 0, %s26
      %s40 = sphi 0, %s42
      %s43 = sphi 0, %s40
      %s44 = sphi 0, %s43
      %s60 = sphi 0, %s44
      %s64 = sphi 0, %s64
      %s66 = sphi 0, %s64
      %s67 = sphi 0, %s66
      %s81 = sphi 0, %s67
      %s85 = sphi 0, %s85
      %s87 = sphi 0, %s85
      %s88 = sphi 0, %s87
      %s102 = sphi 0, %s88
      %s108 = sphi 0, %s110
      %s111 = sphi 0, %s108
      %s112 = sphi 0, %s111
      %s128 = sphi 0, %s112
    $region4: #{tpu_custom_call.1} parent=1 // loop_header_branch
      %19 = sbr.rel (%p17) target = $region8
    $region5: #{tpu_custom_call.1} parent=1 // loop_body
      %s21 = ssub.s32 %s16, 1
      %s22 = ssub.s32 %s16, 2
      %s29 = sadd.s32 1, %s24
      %p30 = scmp.ge.s32.totalorder %s29, 2
      %s31 = scalar_select %p30, 0, %s29
      %s32 = sadd.s32 1, %s23
      %s33 = scalar_select %p30, %s32, %s23
      %p34 = scmp.ge.s32.totalorder %s33, 4
      %s35 = scalar_select %p34, 0, %s33
      %s36 = ssub.s32 %s23, %s35
      %s37 = ssub.s32 %s24, %s31
      %s38 = sor.u32 %s36, %s37
      %p39 = scmp.eq.s32.totalorder %s38, 0
      %s41 = sadd.s32 %s40, 1
      %s42 = scalar_select %p39, %s40, %s41
      %p45 = pneg %p39
      %p46 = scmp.eq.s32.totalorder %s16, 7
      %p47 = por %p45, %p46
      %p48 = scmp.ne.s32.totalorder %s40, %s43
      %p49 = scmp.eq.s32.totalorder %s16, 0
      %p50 = por %p48, %p49
      %p51 = scmp.ne.s32.totalorder %s40, %s43
      %p52 = scmp.eq.s32.totalorder %s21, 7
      %p53 = por %p51, %p52
      %p54 = scmp.ne.s32.totalorder %s43, %s44
      %p55 = scmp.eq.s32.totalorder %s21, 0
      %p56 = por %p54, %p55
      %p57 = scmp.ne.s32.totalorder %s43, %s44
      %p58 = scmp.eq.s32.totalorder %s22, 7
      %p59 = por %p57, %p58
      %p61 = scmp.ne.s32.totalorder %s44, %s60
      %p62 = scmp.eq.s32.totalorder %s22, 0
      %p63 = por %p61, %p62
      %s65 = sadd.s32 %s64, 1
      %p68 = scmp.eq.s32.totalorder %s16, 7
      %p69 = scmp.ne.s32.totalorder %s64, %s66
      %p70 = scmp.eq.s32.totalorder %s16, 0
      %p71 = por %p69, %p70
      %p72 = scmp.ne.s32.totalorder %s64, %s66
      %p73 = scmp.eq.s32.totalorder %s21, 7
      %p74 = por %p72, %p73
      %p75 = scmp.ne.s32.totalorder %s66, %s67
      %p76 = scmp.eq.s32.totalorder %s21, 0
      %p77 = por %p75, %p76
      %p78 = scmp.ne.s32.totalorder %s66, %s67
      %p79 = scmp.eq.s32.totalorder %s22, 7
      %p80 = por %p78, %p79
      %p82 = scmp.ne.s32.totalorder %s67, %s81
      %p83 = scmp.eq.s32.totalorder %s22, 0
      %p84 = por %p82, %p83
      %s86 = sadd.s32 %s85, 1
      %p89 = scmp.eq.s32.totalorder %s16, 7
      %p90 = scmp.ne.s32.totalorder %s85, %s87
      %p91 = scmp.eq.s32.totalorder %s16, 0
      %p92 = por %p90, %p91
      %p93 = scmp.ne.s32.totalorder %s85, %s87
      %p94 = scmp.eq.s32.totalorder %s21, 7
      %p95 = por %p93, %p94
      %p96 = scmp.ne.s32.totalorder %s87, %s88
      %p97 = scmp.eq.s32.totalorder %s21, 0
      %p98 = por %p96, %p97
      %p99 = scmp.ne.s32.totalorder %s87, %s88
      %p100 = scmp.eq.s32.totalorder %s22, 7
      %p101 = por %p99, %p100
      %p103 = scmp.ne.s32.totalorder %s88, %s102
      %p104 = scmp.eq.s32.totalorder %s22, 0
      %p105 = por %p103, %p104
      %s106 = ssub.s32 %s23, %s35
      %p107 = scmp.eq.s32.totalorder %s106, 0
      %s109 = sadd.s32 %s108, 1
      %s110 = scalar_select %p107, %s108, %s109
      %p113 = pneg %p107
      %p114 = scmp.eq.s32.totalorder %s16, 7
      %p115 = por %p113, %p114
      %p116 = scmp.ne.s32.totalorder %s108, %s111
      %p117 = scmp.eq.s32.totalorder %s16, 0
      %p118 = por %p116, %p117
      %p119 = scmp.ne.s32.totalorder %s108, %s111
      %p120 = scmp.eq.s32.totalorder %s21, 7
      %p121 = por %p119, %p120
      %p122 = scmp.ne.s32.totalorder %s111, %s112
      %p123 = scmp.eq.s32.totalorder %s21, 0
      %p124 = por %p122, %p123
      %p125 = scmp.ne.s32.totalorder %s111, %s112
      %p126 = scmp.eq.s32.totalorder %s22, 7
      %p127 = por %p125, %p126
      %p129 = scmp.ne.s32.totalorder %s112, %s128
      %p130 = scmp.eq.s32.totalorder %s22, 0
      %p131 = por %p129, %p130
      %p132 = scmp.le.s32.totalorder 1, %s16
      %p133 = scmp.lt.s32.totalorder %s16, 9
      %p134 = pnand %p132, %p133
      %p135 = pneg %p134
      // Predicated region
      $region9: #{tpu_custom_call.1} parent=5 // pred_check
        _
      $region10: #{tpu_custom_call.1} parent=5 // pred_check_branch
        %137 = sbr.rel (%p134) target = $region12
      $region11: #{tpu_custom_call.1} parent=5 // pred_region
        %s138 = ssub.s32 %s16, 1
        // Predicated region
        $region13: #{tpu_custom_call.1} parent=11 // pred_check
          %p139 = pneg %p77
        $region14: #{tpu_custom_call.1} parent=11 // pred_check_branch
          %141 = sbr.rel (%p139) target = $region16
        $region15: #{tpu_custom_call.1} parent=11 // pred_region
          %s143 = ssub.s32 64, 64
          %144 = vsyncadd [#allocation7], %s143
          %s146 = sshll.u32 [#allocation6], 4
          %s147 = int_to_ptr.vmem [resolvable:$true] %s146
          %149 = dma.hbm_to_vmem [thread:$0]  %s1, 64, %s147, [#allocation7]
        $region16: #{tpu_custom_call.1} parent=11 // pred_fallthru
          _
        // Predicated region
        $region17: #{tpu_custom_call.1} parent=11 // pred_check
          %p150 = pneg %p98
        $region18: #{tpu_custom_call.1} parent=11 // pred_check_branch
          %152 = sbr.rel (%p150) target = $region20
        $region19: #{tpu_custom_call.1} parent=11 // pred_region
          _
        $region20: #{tpu_custom_call.1} parent=11 // pred_fallthru
          _
      $region12: #{tpu_custom_call.1} parent=5 // pred_fallthru
        _
      %p153 = scmp.lt.s32.totalorder %s16, 8
      // Predicated region
      $region21: #{tpu_custom_call.1} parent=5 // pred_check
        %p154 = pneg %p153
      $region22: #{tpu_custom_call.1} parent=5 // pred_check_branch
        %156 = sbr.rel (%p154) target = $region24
      $region23: #{tpu_custom_call.1} parent=5 // pred_region
        // Predicated region
        $region25: #{tpu_custom_call.1} parent=23 // pred_check
          %p157 = pneg %p50
        $region26: #{tpu_custom_call.1} parent=23 // pred_check_branch
          %159 = sbr.rel (%p157) target = $region28
        $region27: #{tpu_custom_call.1} parent=23 // pred_region
          %s160 = sand.u32 %s40, 1
          %s161 = scalar_lea.sflag [#allocation4], %s160
          %s162 = sand.u32 %s40, 1
          %s163 = smul.addr %s162, 8
          %s164 = scalar_lea.vmem [#allocation3], %s163
          %s165 = smul.u32 2, %s23
          %s167 = ssub.s32 128, 128
          %168 = vsyncadd %s161, %s167
          %s169 = smul.addr %s165, 2
          %s170 = sadd.s32 %s24, %s169
          %s171 = smul.addr %s170, 64
          %s172 = scalar_lea.hbm %s0, %s171
          %s173 = sshll.u32 %s164, 4
          %s174 = int_to_ptr.vmem [resolvable:$true] %s173
          %179 = dma.hbm_to_vmem [thread:$0]  %s172, 128, %s174, %s161, 128, 64, 4
        $region28: #{tpu_custom_call.1} parent=23 // pred_fallthru
          _
      $region24: #{tpu_custom_call.1} parent=5 // pred_fallthru
        _
      %p180 = scmp.le.s32.totalorder 1, %s16
      %p181 = scmp.lt.s32.totalorder %s16, 9
      %p182 = pnand %p180, %p181
      %p183 = pneg %p182
      // Predicated region
      $region29: #{tpu_custom_call.1} parent=5 // pred_check
        _
      $region30: #{tpu_custom_call.1} parent=5 // pred_check_branch
        %185 = sbr.rel (%p182) target = $region32
      $region31: #{tpu_custom_call.1} parent=5 // pred_region
        %s186 = ssub.s32 %s16, 1
        %s187 = sand.u32 %s43, 1
        %s188 = scalar_lea.sflag [#allocation4], %s187
        %s189 = sand.u32 %s43, 1
        %s190 = smul.addr %s189, 8
        %s191 = scalar_lea.vmem [#allocation3], %s190
        // Predicated region
        $region33: #{tpu_custom_call.1} parent=31 // pred_check
          %p192 = pneg %p56
        $region34: #{tpu_custom_call.1} parent=31 // pred_check_branch
          %194 = sbr.rel (%p192) target = $region36
        $region35: #{tpu_custom_call.1} parent=31 // pred_region
          %195 = dma.done %s188, 128
        $region36: #{tpu_custom_call.1} parent=31 // pred_fallthru
          _
        // Predicated region
        $region37: #{tpu_custom_call.1} parent=31 // pred_check
          %p196 = pneg %p77
        $region38: #{tpu_custom_call.1} parent=31 // pred_check_branch
          %198 = sbr.rel (%p196) target = $region40
        $region39: #{tpu_custom_call.1} parent=31 // pred_region
          %199 = dma.done [#allocation7], 64
        $region40: #{tpu_custom_call.1} parent=31 // pred_fallthru
          _
        %s200 = sand.u32 %s43, 1
        %s201 = scalar_lea.sflag [#allocation4], %s200
        %s202 = sand.u32 %s43, 1
        %s203 = smul.addr %s202, 8
        %s204 = scalar_lea.vmem [#allocation3], %s203
        %p205 = pneg %p56
        %p206 = pneg %p53
        %p207 = pneg %p77
        %p208 = pneg %p74
        %p209 = pneg %p98
        %p210 = pneg %p95
        %p211 = pneg %p124
        %p212 = pneg %p121
        %s213 = sand.u32 %s111, 1
        %s214 = scalar_lea.sflag [#allocation5], %s213
        %s215 = sand.u32 %s111, 1
        %s216 = smul.addr %s215, 2
        %s217 = scalar_lea.vmem [#allocation8], %s216
        %s218 = smul.u32 2, %s25
        %s219 = smul.u32 2, %s25
        %p220 = scmp.eq.s32.totalorder %s26, 0
        // Predicated region
        $region41: #{tpu_custom_call.1} parent=31 // pred_check
          %p221 = pneg %p220
        $region42: #{tpu_custom_call.1} parent=31 // pred_check_branch
          %223 = sbr.rel (%p221) target = $region44
        $region43: #{tpu_custom_call.1} parent=31 // pred_region
          %vm224 = vcmask 25600
          %225 = vst.msk [vmem:[#allocation2] sm:$0x3] %vm224, 0.0
        $region44: #{tpu_custom_call.1} parent=31 // pred_fallthru
          _
        %v226 = vld [vmem:[#allocation2] sm:$0x3]
        %v227 = vld [vmem:[%s191] sm:$0xf]
        %v228 = vld [vmem:[%s191 + $0x4] sm:$0xf]
        %vm229 = vcmask 1043456
        %v230 = vsel %vm229, %v227, 0.0
        %231 = vadd.xlane.f32.xlu0 %v230
        %v232 = vpop.xlane.xlu0 %231
        %v233 = vsel %vm229, %v228, 0.0
        %234 = vadd.xlane.f32.xlu0 %v233
        %v235 = vpop.xlane.xlu0 %234
        %v238 = vlaneseq
        %v239 = vand.u32 %v238, 127
        %v240 = vlaneseq
        %v241 = vshrl.u32 %v240, 7
        %v242 = vsub.s32 %v239, %v241
        %v243 = vrot.slane %v232, %v242
        %v244 = vlaneseq
        %v245 = vshrl.u32 %v244, 7
        %v246 = vsub.s32 %v239, %v245
        %v247 = vrot.slane %v235, %v246
        %vm248 = vcmask 1041409
        %v249 = vsel %vm248, %v247, %v243
        %v251 = vadd.f32 %v226, %v249
        %vm252 = vcmask 25600
        %253 = vst.msk [vmem:[#allocation2] sm:$0x3] %vm252, %v251
        %p254 = scmp.eq.s32.totalorder %s26, 1
        // Predicated region
        $region45: #{tpu_custom_call.1} parent=31 // pred_check
          %p255 = pneg %p254
        $region46: #{tpu_custom_call.1} parent=31 // pred_check_branch
          %257 = sbr.rel (%p255) target = $region48
        $region47: #{tpu_custom_call.1} parent=31 // pred_region
          %v258 = vld [vmem:[#allocation2] sm:$0x3]
          %v259 = vmul.f32 %v258, 0.00390625
          %v260 = vld [vmem:[%s2] sm:$0x1]
          %v261 = vld [vmem:[#allocation6] sm:$0xf]
          %v263 = vlaneseq
          %v264 = vshrl.u32 %v263, 7
          %v265 = vsub.s32 0, %v264
          %v266 = vrot.slane %v260, %v265
          %269 = vset.pattern.permute.xlu0 0
          %270 = vperm.xlu0 %269, %v259
          %v271 = vpop.permute.xlu0 %270
          %v273 = vlaneseq
          %v274 = vshrl.u32 %v273, 7
          %v275 = vsub.s32 0, %v274
          %v276 = vrot.slane %v261, %v275
          %v277 = vmul.f32 %v271, %v276
          %v278 = vadd.f32 %v266, %v277
          %279 = vset.pattern.permute.xlu0 1
          %280 = vperm.xlu0 %279, %v259
          %v281 = vpop.permute.xlu0 %280
          %v283 = vlaneseq
          %v284 = vshrl.u32 %v283, 7
          %v285 = vsub.s32 1, %v284
          %v286 = vrot.slane %v261, %v285
          %v287 = vmul.f32 %v281, %v286
          %v288 = vadd.f32 %v278, %v287
          %289 = vset.pattern.permute.xlu0 2
          %290 = vperm.xlu0 %289, %v259
          %v291 = vpop.permute.xlu0 %290
          %v293 = vlaneseq
          %v294 = vshrl.u32 %v293, 7
          %v295 = vsub.s32 2, %v294
          %v296 = vrot.slane %v261, %v295
          %v297 = vmul.f32 %v291, %v296
          %v298 = vadd.f32 %v288, %v297
          %299 = vset.pattern.permute.xlu0 3
          %300 = vperm.xlu0 %299, %v259
          %v301 = vpop.permute.xlu0 %300
          %v303 = vlaneseq
          %v304 = vshrl.u32 %v303, 7
          %v305 = vsub.s32 3, %v304
          %v306 = vrot.slane %v261, %v305
          %v307 = vmul.f32 %v301, %v306
          %v308 = vadd.f32 %v298, %v307
          %v309 = vxor.u32 %v308, 2147483648
          %v310 = vmul.f32 %v309, 1.442695
          %v311 = vpow.pop %v310
          %v312 = vadd.f32 %v311, 1.0
          %v313 = vrcp.pop %v312
          %v314 = vmul.f32 1.0, %v313
          %v315 = vmul.f32 %v314, 16.0
          %v318 = vunpack.c.l.s4 1966171168
          %v319 = vunpack.c.0.s8 %v318
          %v320 = vlaneseq
          %v321 = vshrl.u32 %v320, 7
          %v322 = vsub.s32 %v319, %v321
          %v323 = vrot.slane %v315, %v322
          %v324 = vcombine.high %v323, %v323
          %v326 = vunpack.c.l.s4 1966171168
          %v327 = vunpack.c.0.s8 %v326
          %v328 = vlaneseq
          %v329 = vshrl.u32 %v328, 7
          %v330 = vsub.s32 %v327, %v329
          %v331 = vrot.slane %v323, %v330
          %v333 = vunpack.c.l.s4 1966171168
          %v334 = vunpack.c.0.s8 %v333
          %v335 = vlaneseq
          %v336 = vshrl.u32 %v335, 7
          %v337 = vsub.s32 %v334, %v336
          %v338 = vrot.slane %v324, %v337
          %vm341 = vcmask 516096
          %342 = vst.msk [vmem:[%s217] sm:$0x1] %vm341, %v331
          %343 = vst.msk [vmem:[%s217 + $0x1] sm:$0x1] %vm341, %v338
        $region48: #{tpu_custom_call.1} parent=31 // pred_fallthru
          _
        %s344 = sand.u32 %s111, 1
        %s345 = scalar_lea.sflag [#allocation5], %s344
        %s346 = sand.u32 %s111, 1
        %s347 = smul.addr %s346, 2
        %s348 = scalar_lea.vmem [#allocation8], %s347
        // Predicated region
        $region49: #{tpu_custom_call.1} parent=31 // pred_check
          %p349 = pneg %p121
        $region50: #{tpu_custom_call.1} parent=31 // pred_check_branch
          %351 = sbr.rel (%p349) target = $region52
        $region51: #{tpu_custom_call.1} parent=31 // pred_region
          %s352 = smul.u32 2, %s25
          %s354 = ssub.s32 32, 32
          %355 = vsyncadd %s345, %s354
          %s356 = smul.addr %s352, 16
          %s357 = scalar_lea.hbm %s3, %s356
          %s358 = sshll.u32 %s348, 4
          %s359 = int_to_ptr.vmem [resolvable:$true] %s358
          %364 = dma.vmem_to_hbm [thread:$0]  %s359, 32, %s357, %s345, 16, 16, 1
        $region52: #{tpu_custom_call.1} parent=31 // pred_fallthru
          _
      $region32: #{tpu_custom_call.1} parent=5 // pred_fallthru
        _
      %p365 = scmp.le.s32.totalorder 2, %s16
      // Predicated region
      $region53: #{tpu_custom_call.1} parent=5 // pred_check
        %p366 = pneg %p365
      $region54: #{tpu_custom_call.1} parent=5 // pred_check_branch
        %368 = sbr.rel (%p366) target = $region56
      $region55: #{tpu_custom_call.1} parent=5 // pred_region
        %s369 = ssub.s32 %s16, 2
        // Predicated region
        $region57: #{tpu_custom_call.1} parent=55 // pred_check
          %p370 = pneg %p127
        $region58: #{tpu_custom_call.1} parent=55 // pred_check_branch
          %372 = sbr.rel (%p370) target = $region60
        $region59: #{tpu_custom_call.1} parent=55 // pred_region
          %s373 = sand.u32 %s112, 1
          %s374 = scalar_lea.sflag [#allocation5], %s373
          %s375 = sand.u32 %s112, 1
          %s376 = smul.addr %s375, 2
          %s377 = scalar_lea.vmem [#allocation8], %s376
          %378 = dma.done %s374, 32
        $region60: #{tpu_custom_call.1} parent=55 // pred_fallthru
          _
      $region56: #{tpu_custom_call.1} parent=5 // pred_fallthru
        _
    $region6: #{tpu_custom_call.1} parent=1 // loop_footer
      %s20 = sadd.s32 1, %s16
    $region7: #{tpu_custom_call.1} parent=1 // loop_footer_branch
      %15 = sbr.rel target = $region3
    $region8: #{tpu_custom_call.1} parent=1 // loop_exit
      _
    %379 = vsyncpa [#allocation4], 1
    %s380 = scalar_lea.sflag [#allocation4], 1
    %381 = vsyncpa %s380, 1
    %382 = vsyncpa [#allocation7], 1
    %383 = vsyncpa [#allocation5], 1
    %s384 = scalar_lea.sflag [#allocation5], 1
    %385 = vsyncpa %s384, 1

</llo_original>
